<compile_context>
chip_gen: v7x
topology: tpu7x:2x2x1
jax: 0.10.0
libtpu: 0.0.40
codegen_flags: <defaults>
</compile_context>

<pallas_src>
import jax
import jax.numpy as jnp
from jax import lax
from jax.experimental import pallas as pl
from jax.experimental.pallas import tpu as pltpu

EPS = 1e-6


def _make_kernel(R, T, tR, tT, eps, hard_targets=False):
    """Build the per-tile kernel (static shapes / eps baked in as Python consts)."""
    mask_rows = (R % tR) != 0
    mask_cols = (T % tT) != 0
    eps = float(eps)

    def kernel(scale_ref, pred_ref, tgt_ref, out_ref):
        # scale_ref : VMEM (tR, 1)  f32  -- weights[c] / (B*T) per row
        # pred_ref  : VMEM (tR, tT)      -- predictions tile
        # tgt_ref   : VMEM (tR, tT)      -- targets tile
        # out_ref   : VMEM (1,1,1,1) f32 -- this tile's partial loss
        p = pred_ref[...].astype(jnp.float32)
        t = tgt_ref[...].astype(jnp.float32)

        # clamp(eps, 1-eps) then binary cross entropy
        p = jnp.clip(p, jnp.float32(eps), jnp.float32(1.0 - eps))
        if hard_targets:
            # targets known to be exactly {0,1}: single transcendental / elem
            bce = -jnp.log(jnp.where(t >= 0.5, p, 1.0 - p))
        else:
            # soft-target form, re-associated:
            #   -(t*log(p) + (1-t)*log1p(-p)) == t*(log1p(-p)-log(p)) - log1p(-p)
            lp = jnp.log(p)
            lq = jnp.log1p(-p)
            bce = t * (lq - lp) - lq

        def _reduce_and_store(vals):
            # Lane reduction first, THEN the (tR,) row-scale multiply.
            row_sums = jnp.sum(vals, axis=1, keepdims=True)          # (tR, 1)
            out_ref[...] = jnp.sum(row_sums * scale_ref[...]).reshape(1, 1, 1, 1)

        if not (mask_rows or mask_cols):
            _reduce_and_store(bce)
        else:
            # Edge masking only on the last row/col tiles; interior tiles
            # take the cheap path.
            conds = []
            if mask_rows:
                conds.append(pl.program_id(0) == pl.num_programs(0) - 1)
            if mask_cols:
                conds.append(pl.program_id(1) == pl.num_programs(1) - 1)
            is_edge = conds[0]
            for c in conds[1:]:
                is_edge = jnp.logical_or(is_edge, c)

            @pl.when(jnp.logical_not(is_edge))
            def _():
                _reduce_and_store(bce)

            @pl.when(is_edge)
            def _():
                valid = None
                if mask_rows:
                    rid = (lax.broadcasted_iota(jnp.int32, (tR, tT), 0)
                           + pl.program_id(0) * tR)
                    valid = rid < R
                if mask_cols:
                    cid = (lax.broadcasted_iota(jnp.int32, (tR, tT), 1)
                           + pl.program_id(1) * tT)
                    vc = cid < T
                    valid = vc if valid is None else (valid & vc)
                # Keep the where(): padded lanes may hold NaN garbage and
                # must be zeroed before the reduction.
                _reduce_and_store(jnp.where(valid, bce, jnp.float32(0.0)))

    return kernel


def phasenet_loss(prediction, target, weights, eps=EPS, hard_targets=False):
    """prediction, target: (B, C, T); weights: (C,). Returns scalar f32 loss."""
    B, C, T = prediction.shape
    assert target.shape == prediction.shape
    assert weights.shape == (C,)

    R = B * C
    # Free reshape (contiguous dim merge) -- no transpose, no extra HBM pass.
    pred2d = prediction.reshape(R, T)
    tgt2d = target.reshape(R, T)

    # Row r = b*C + c  ->  channel c = r % C. Fold weight and the per-channel
    # mean divisor 1/(B*T) into one tiny per-row scale vector.
    row_scale = (jnp.tile(weights.astype(jnp.float32), B)
                 / jnp.float32(B * T)).reshape(R, 1)

    # Tile selection: full dim when small (always legal), otherwise
    # (8,128)/(16,128)-aligned tiles. 512x2048 f32 => 16 MiB double-buffered
    # working set for the two inputs -- fits every generation's VMEM.
    tR = R if R <= 512 else 512
    tT = T if T <= 2048 else 2048

    # v7x has 2 TensorCores: if the grid would collapse to one step, split a
    # legal axis so both cores get work (no-op for tiny shapes).
    if pl.cdiv(R, tR) * pl.cdiv(T, tT) == 1:
        if T >= 256 and T % 256 == 0:
            tT = T // 2
        elif R >= 16 and R % 16 == 0:
            tR = R // 2

    nR = pl.cdiv(R, tR)
    nT = pl.cdiv(T, tT)

    kernel = _make_kernel(R, T, tR, tT, eps, hard_targets=hard_targets)

    compiler_kwargs = dict(dimension_semantics=("parallel", "parallel"))
    # Double-buffered input working set; v5e's default scoped VMEM is 16 MiB,
    # so bump the limit for the larger tiles (32 MiB is within every
    # generation's physical / default-scoped budget).
    in_itemsize = prediction.dtype.itemsize + target.dtype.itemsize
    dbuf_bytes = 2 * tR * tT * in_itemsize
    if dbuf_bytes > 12 * (1 << 20):
        compiler_kwargs["vmem_limit_bytes"] = 32 * (1 << 20)

    partials = pl.pallas_call(
        kernel,
        out_shape=jax.ShapeDtypeStruct((nR, nT, 1, 1), jnp.float32),
        grid=(nR, nT),
        in_specs=[
            pl.BlockSpec((tR, 1), lambda i, j: (i, 0)),     # per-row scales
            pl.BlockSpec((tR, tT), lambda i, j: (i, j)),    # predictions
            pl.BlockSpec((tR, tT), lambda i, j: (i, j)),    # targets
        ],
        out_specs=pl.BlockSpec((1, 1, 1, 1), lambda i, j: (i, j, 0, 0)),
        compiler_params=pltpu.CompilerParams(**compiler_kwargs),
    )(row_scale, pred2d, tgt2d)

    # Final reduction over a handful of per-tile partials: negligible.
    return jnp.sum(partials)


def _reference_loss(prediction, target, weights, eps=EPS):
    """Pure-JAX mirror of the PyTorch forward for verification."""
    loss = jnp.float32(0.0)
    for c in range(prediction.shape[1]):
        p = jnp.clip(prediction[:, c].astype(jnp.float32), eps, 1.0 - eps)
        t = target[:, c].astype(jnp.float32)
        bce = -(t * jnp.log(p) + (1.0 - t) * jnp.log(1.0 - p))
        loss += weights[c] * jnp.mean(bce)
    return loss


if __name__ == "__main__":
    key = jax.random.PRNGKey(0)
    k_pred, k_tgt = jax.random.split(key)

    B, C, T = 2, 2, 128  # PhaseNet-style (batch, phase-channel, time)

    # predictions in (0, 1) as if post-softmax/sigmoid; soft targets in [0, 1]
    prediction = jax.random.uniform(k_pred, (B, C, T), dtype=jnp.float32,
                                    minval=0.001, maxval=0.999)
    target = jax.random.uniform(k_tgt, (B, C, T), dtype=jnp.float32)

    # module default weights = [0.1, 1.0]
    weights = jnp.array([0.1, 1.0], dtype=jnp.float32)

    loss = phasenet_loss(prediction, target, weights)
    loss = jax.block_until_ready(loss)

    ref = _reference_loss(prediction, target, weights)
    assert jnp.allclose(loss, ref, rtol=1e-5, atol=1e-6), (loss, ref)

    # Also exercise a ragged / multi-tile shape so the pl.when edge path and
    # the deferred-scale reduction get covered.
    B2, C2, T2 = 3, 2, 200
    k1, k2 = jax.random.split(k_tgt)
    pred2 = jax.random.uniform(k1, (B2, C2, T2), dtype=jnp.float32,
                               minval=0.001, maxval=0.999)
    tgt2 = jax.random.uniform(k2, (B2, C2, T2), dtype=jnp.float32)
    loss2 = jax.block_until_ready(phasenet_loss(pred2, tgt2, weights))
    ref2 = _reference_loss(pred2, tgt2, weights)
    assert jnp.allclose(loss2, ref2, rtol=1e-5, atol=1e-6), (loss2, ref2)

    print("KERNEL_OK")
</pallas_src>

<mosaic_0001>
module attributes {stable_mosaic.version = 11 : i64} {
  func.func @kernel(%arg0: i32, %arg1: i32, %arg2: memref<4x1xf32, #tpu.memory_space<vmem>>, %arg3: memref<4x128xf32, #tpu.memory_space<vmem>>, %arg4: memref<4x128xf32, #tpu.memory_space<vmem>>, %arg5: memref<1x1x1x1xf32, #tpu.memory_space<vmem>>) attributes {dimension_semantics = [#tpu.dimension_semantics<parallel>, #tpu.dimension_semantics<parallel>], iteration_bounds = array<i64: 1, 1>, scalar_prefetch = 0 : i64, scratch_operands = 0 : i64, tpu.core_type = #tpu.core_type<tc>, window_params = [{transform_indices = @transform_0, window_bounds = array<i64: 4, 1>}, {transform_indices = @transform_1, window_bounds = array<i64: 4, 128>}, {transform_indices = @transform_2, window_bounds = array<i64: 4, 128>}, {transform_indices = @transform_3, window_bounds = array<i64: 1, 1, 1, 1>}]} {
    %c0 = arith.constant 0 : index
    %c0_0 = arith.constant 0 : index
    %0 = vector.load %arg3[%c0, %c0_0] : memref<4x128xf32, #tpu.memory_space<vmem>>, vector<4x128xf32>
    %c0_1 = arith.constant 0 : index
    %c0_2 = arith.constant 0 : index
    %1 = vector.load %arg4[%c0_1, %c0_2] : memref<4x128xf32, #tpu.memory_space<vmem>>, vector<4x128xf32>
    %cst = arith.constant 9.99999997E-7 : f32
    %cst_3 = arith.constant 0.999998986 : f32
    %2 = vector.broadcast %cst : f32 to vector<4x128xf32>
    %3 = arith.maximumf %2, %0 : vector<4x128xf32>
    %4 = vector.broadcast %cst_3 : f32 to vector<4x128xf32>
    %5 = arith.minimumf %4, %3 : vector<4x128xf32>
    %6 = math.log %5 : vector<4x128xf32>
    %cst_4 = arith.constant 0.000000e+00 : f32
    %7 = vector.broadcast %cst_4 : f32 to vector<4x128xf32>
    %8 = arith.subf %7, %5 : vector<4x128xf32>
    %9 = math.log1p %8 : vector<4x128xf32>
    %10 = arith.subf %9, %6 : vector<4x128xf32>
    %11 = arith.mulf %1, %10 : vector<4x128xf32>
    %12 = arith.subf %11, %9 : vector<4x128xf32>
    %cst_5 = arith.constant dense<0.000000e+00> : vector<4xf32>
    %13 = vector.multi_reduction <add>, %12, %cst_5 [1] : vector<4x128xf32> to vector<4xf32>
    %14 = vector.shape_cast %13 : vector<4xf32> to vector<4x1xf32>
    %c0_6 = arith.constant 0 : index
    %c0_7 = arith.constant 0 : index
    %15 = vector.load %arg2[%c0_6, %c0_7] : memref<4x1xf32, #tpu.memory_space<vmem>>, vector<4x1xf32>
    %16 = arith.mulf %14, %15 : vector<4x1xf32>
    %17 = vector.shape_cast %16 : vector<4x1xf32> to vector<1x4x1xf32>
    %cst_8 = arith.constant dense<0.000000e+00> : vector<1xf32>
    %18 = vector.multi_reduction <add>, %17, %cst_8 [1, 2] : vector<1x4x1xf32> to vector<1xf32>
    %19 = vector.shape_cast %18 : vector<1xf32> to vector<1x1x1xf32>
    %20 = vector.extract %19[0, 0, 0] : f32 from vector<1x1x1xf32>
    %21 = vector.broadcast %20 : f32 to vector<1x1x1x1xf32>
    %c0_9 = arith.constant 0 : index
    %c0_10 = arith.constant 0 : index
    %c0_11 = arith.constant 0 : index
    %c0_12 = arith.constant 0 : index
    %22 = vector.load %arg5[%c0_9, %c0_10, %c0_11, %c0_12] : memref<1x1x1x1xf32, #tpu.memory_space<vmem>>, vector<1x1x1x1xf32>
    tpu.vector_store %arg5[%c0_9, %c0_10, %c0_11, %c0_12], %21 {strides = array<i32>} : memref<1x1x1x1xf32, #tpu.memory_space<vmem>>, vector<1x1x1x1xf32>,
    return
  }
  func.func @transform_0(%arg0: i32, %arg1: i32) -> (i32, i32) {
    %c0_i32 = arith.constant 0 : i32
    %c0_i32_0 = arith.constant 0 : i32
    return %arg0, %c0_i32 : i32, i32
  }
  func.func @transform_1(%arg0: i32, %arg1: i32) -> (i32, i32) {
    %c0_i32 = arith.constant 0 : i32
    return %arg0, %arg1 : i32, i32
  }
  func.func @transform_2(%arg0: i32, %arg1: i32) -> (i32, i32) {
    %c0_i32 = arith.constant 0 : i32
    return %arg0, %arg1 : i32, i32
  }
  func.func @transform_3(%arg0: i32, %arg1: i32) -> (i32, i32, i32, i32) {
    %c0_i32 = arith.constant 0 : i32
    %c0_i32_0 = arith.constant 0 : i32
    %c0_i32_1 = arith.constant 0 : i32
    return %arg0, %arg1, %c0_i32, %c0_i32_0 : i32, i32, i32, i32
  }
}

</mosaic_0001>

<llo_original>
// kernel: tpu_custom_call.1
$region0: #{tpu_custom_call.1}
  #allocation0 [shape = 'u32[]', space=smem, size = 0x4, offset = 0x4, fixed_abs, tag = 'smem constant byte address 0x4 - core index']
  #allocation1 [shape = 'u32[144,128]{1,0:T(1,128)}', space=vmem, size = 0x12000, scoped, tag = 'internal scratch']
  %s0 = inlined_call_operand.vmem [shape: f32[4,1], index: 0, kind: input, shape index: {}]
  %s1 = inlined_call_operand.vmem [shape: f32[4,128], index: 1, kind: input, shape index: {}]
  %s2 = inlined_call_operand.vmem [shape: f32[4,128], index: 2, kind: input, shape index: {}]
  %s3 = inlined_call_operand.hbm [shape: f32[1,1,1,1], index: 3, kind: output, shape index: {}]
  %s4 = sld [smem:[#allocation0]]
  $region22: #{tpu_custom_call.1} parent=0
    _
  %s6 = ssub.s32 1, %s4
  %s7 = scalar_select 0, %s6, %s4
  $region1: #{tpu_custom_call.1} parent=0
    #allocation2 [shape = 'u8[512]{0}', space=vmem, size = 0x400, scoped, tag = 'output window, operand 0, single buffered']
    #allocation3 [shape = 's32[1]{0}', space=sflag, size = 0x4, scoped, tag = 'scoped memory for tpu_custom_call.1']
    %8 = vsyncpa [#allocation3], 0
    // Predicated region
    $region2: #{tpu_custom_call.1} parent=1 // pred_check
      _
    $region3: #{tpu_custom_call.1} parent=1 // pred_check_branch
      %10 = sbr.rel (0) target = $region5
    $region4: #{tpu_custom_call.1} parent=1 // pred_region
      _
    $region5: #{tpu_custom_call.1} parent=1 // pred_fallthru
      _
    // Predicated region
    $region6: #{tpu_custom_call.1} parent=1 // pred_check
      _
    $region7: #{tpu_custom_call.1} parent=1 // pred_check_branch
      %12 = sbr.rel (0) target = $region9
    $region8: #{tpu_custom_call.1} parent=1 // pred_region
      _
    $region9: #{tpu_custom_call.1} parent=1 // pred_fallthru
      _
    // Predicated region
    $region10: #{tpu_custom_call.1} parent=1 // pred_check
      _
    $region11: #{tpu_custom_call.1} parent=1 // pred_check_branch
      %14 = sbr.rel (0) target = $region13
    $region12: #{tpu_custom_call.1} parent=1 // pred_region
      _
    $region13: #{tpu_custom_call.1} parent=1 // pred_fallthru
      _
    %v15 = vld [vmem:[%s1] sm:$0xf]
    %v16 = vld [vmem:[%s2] sm:$0xf]
    %v17 = vmax.f32 %v15, 1e-06
    %v18 = vmin.f32 %v17, 0.999999
    %v19 = vlog2.pop %v18
    %v20 = vmul.f32 %v19, 0.6931472
    %v21 = vsub.f32 0.0, %v18
    %v22 = vadd.f32 %v21, 1.0
    %v23 = vlog2.pop %v22
    %v24 = vmul.f32 %v23, 0.6931472
    %v25 = vmul.f32 -0.5, %v21
    %v26 = vadd.f32 %v25, 1.0
    %v27 = vmul.f32 %v26, %v21
    %v28 = vand.u32 2147483647, %v21
    %vm29 = vcmp.lt.f32.partialorder %v28, 0.0004427343
    %v30 = vsel %vm29, %v27, %v24
    %v31 = vsub.f32 %v30, %v20
    %v32 = vmul.f32 %v16, %v31
    %v33 = vsub.f32 %v32, %v30
    %vm34 = vcmask 1043456
    %v35 = vsel %vm34, %v33, 0.0
    %36 = vadd.xlane.f32.xlu0 %v35
    %v37 = vpop.xlane.xlu0 %36
    %v38 = vld [vmem:[%s0] sm:$0xf]
    %v39 = vmul.f32 %v37, %v38
    %vm40 = vcmask 3072
    %v41 = vsel %vm40, %v39, 0.0
    %42 = vadd.xlane.f32.xlu0 %v41
    %v43 = vpop.xlane.xlu0 %42
    %v44 = vrot.slane %v43, 4
    %v45 = vadd.f32 %v43, %v44
    %v46 = vrot.slane %v45, 2
    %v47 = vadd.f32 %v45, %v46
    %v48 = vrot.slane %v47, 1
    %v49 = vadd.f32 %v47, %v48
    %s50 = vtos %v49
    %v51 = vstv %s50
    %vm52 = vcmask 0
    %53 = vst.msk [vmem:[#allocation2] sm:$0x1] %vm52, %v51
    // Predicated region
    $region14: #{tpu_custom_call.1} parent=1 // pred_check
      _
    $region15: #{tpu_custom_call.1} parent=1 // pred_check_branch
      %55 = sbr.rel (0) target = $region17
    $region16: #{tpu_custom_call.1} parent=1 // pred_region
      %s57 = ssub.s32 16, 16
      %58 = vsyncadd [#allocation3], %s57
      %s60 = sshll.u32 [#allocation2], 4
      %s61 = int_to_ptr.vmem [resolvable:$true] %s60
      %63 = dma.vmem_to_hbm [thread:$0]  %s61, 16, %s3, [#allocation3]
    $region17: #{tpu_custom_call.1} parent=1 // pred_fallthru
      _
    // Predicated region
    $region18: #{tpu_custom_call.1} parent=1 // pred_check
      _
    $region19: #{tpu_custom_call.1} parent=1 // pred_check_branch
      %65 = sbr.rel (0) target = $region21
    $region20: #{tpu_custom_call.1} parent=1 // pred_region
      %66 = dma.done [#allocation3], 16
    $region21: #{tpu_custom_call.1} parent=1 // pred_fallthru
      _
    %67 = vsyncpa [#allocation3], 1

</llo_original>
